<compile_context>
chip_gen: v6e
topology: v6e:2x2x1
jax: 0.10.0
libtpu: 0.0.40
codegen_flags: <defaults>
</compile_context>

<pallas_src>
import functools
import math

import numpy as np
import jax
import jax.numpy as jnp
from jax import lax
from jax.experimental import pallas as pl
from jax.experimental.pallas import tpu as pltpu


def attention_head_kernel(x_ref, wb_ref, mask_ref, o_ref, *, d_model, head_dim):
    """Single grid step: fused QKV projection + block-diagonal causal attention
    over the whole (flattened) batch."""
    H = head_dim

    x = x_ref[...].astype(jnp.bfloat16)                            # (B*T, D)
    w = wb_ref[0:d_model, :]                                       # (D, 3H) bf16
    b = wb_ref[d_model:d_model + 1, :].astype(jnp.float32)         # (1, 3H)  f32

    # Fused QKV projection: one MXU matmul (bf16 in, f32 accumulation) + bias add.
    qkv = jnp.dot(x, w, preferred_element_type=jnp.float32) + b    # (B*T, 3H) f32

    q = qkv[:, 0:H].astype(jnp.bfloat16)                           # pre-scaled by 1/sqrt(dk)
    k = qkv[:, H:2 * H].astype(jnp.bfloat16)
    v = qkv[:, 2 * H:3 * H].astype(jnp.bfloat16)

    # One (B*T, B*T) score matmul for the whole batch (contract last dims: q @ k^T
    # without materializing a transpose).
    scores = lax.dot_general(
        q, k, dimension_numbers=(((1,), (1,)), ((), ())),
        preferred_element_type=jnp.float32)                        # (B*T, B*T) f32

    # Additive mask: 0 where (same batch block AND col<=row), -1e30 otherwise.
    # The diagonal is always unmasked, so every softmax row has a finite entry.
    scores = scores + mask_ref[...]

    # Numerically stable softmax in f32; normalization deferred past the PV matmul
    # so the EUP reciprocal runs in parallel with the MXU.
    m = jnp.max(scores, axis=-1, keepdims=True)
    p = jnp.exp(scores - m)
    denom = jnp.sum(p, axis=-1, keepdims=True)

    out = jnp.dot(p.astype(jnp.bfloat16), v,
                  preferred_element_type=jnp.float32)              # (B*T, H) f32
    out = out * pl.reciprocal(denom, approx=True)
    o_ref[...] = out.astype(o_ref.dtype)                           # one contiguous store


def prepare_attention_head(wk, bk, wq, bq, wv, bv, *, batch, seq):
    """One-time (init-time) parameter prep: fused bf16 QKV weight+bias buffer and
    the additive block-diagonal causal mask."""
    D, H = wk.shape
    scale = 1.0 / math.sqrt(H)

    w_qkv = jnp.concatenate([wq * scale, wk, wv], axis=1)                   # (D, 3H)
    b_qkv = jnp.concatenate([bq * scale, bk, bv]).reshape(1, 3 * H)         # (1, 3H)
    wb_qkv = jnp.concatenate([w_qkv, b_qkv], axis=0).astype(jnp.bfloat16)   # (D+1, 3H)

    idx = np.arange(batch * seq)
    row, col = idx[:, None], idx[None, :]
    allowed = ((row // seq) == (col // seq)) & (col <= row)
    mask_add = jnp.asarray(np.where(allowed, 0.0, -1e30).astype(np.float32))  # (B*T, B*T)
    return wb_qkv, mask_add


def attention_head(x, wb_qkv, mask_add):
    """x: (B, T, D) float32. wb_qkv: (D+1, 3H) bf16. mask_add: (B*T, B*T) f32.
    Returns (B, T, H) float32."""
    B, T, D = x.shape
    H3 = wb_qkv.shape[1]
    H = H3 // 3
    BT = B * T

    x2d = x.reshape(BT, D)

    flops = 2 * BT * D * H3 + 2 * 2 * BT * BT * H
    transcendentals = BT * BT + BT                     # exp + reciprocal
    bytes_accessed = 4 * x2d.size + 2 * wb_qkv.size + 4 * mask_add.size + 4 * BT * H

    out2d = pl.pallas_call(
        functools.partial(attention_head_kernel, d_model=D, head_dim=H),
        out_shape=jax.ShapeDtypeStruct((BT, H), x.dtype),
        grid_spec=pltpu.PrefetchScalarGridSpec(
            num_scalar_prefetch=0,
            grid=(1,),
            in_specs=[
                pl.BlockSpec((BT, D), lambda i: (0, 0)),        # x (whole batch)
                pl.BlockSpec((D + 1, H3), lambda i: (0, 0)),    # fused W|b (bf16)
                pl.BlockSpec((BT, BT), lambda i: (0, 0)),       # additive mask
            ],
            out_specs=pl.BlockSpec((BT, H), lambda i: (0, 0)),
        ),
        compiler_params=pltpu.CompilerParams(
            dimension_semantics=("arbitrary",)),
        cost_estimate=pl.CostEstimate(
            flops=flops,
            transcendentals=transcendentals,
            bytes_accessed=bytes_accessed),
    )(x2d, wb_qkv, mask_add)

    return out2d.reshape(B, T, H)


def reference(x, wk, bk, wq, bq, wv, bv):
    """Pure-JAX f32 reference mirroring the PyTorch forward (eval mode)."""
    k = x @ wk + bk
    q = x @ wq + bq
    v = x @ wv + bv
    dk = k.shape[-1]
    scores = jnp.einsum("btd,bsd->bts", q, k) / jnp.sqrt(jnp.float32(dk))
    T = x.shape[1]
    mask = jnp.tril(jnp.ones((T, T), dtype=bool))
    scores = jnp.where(mask, scores, -jnp.inf)
    attn = jax.nn.softmax(scores, axis=-1)
    return jnp.einsum("bts,bsd->btd", attn, v)


if __name__ == "__main__":
    # Small config consistent with ModelParams semantics:
    # d_model=32, num_heads=4 -> head_dim=8; batch=2, seq=8.
    B, T, D_MODEL, HEAD_DIM = 2, 8, 32, 8

    key = jax.random.PRNGKey(0)
    kx, kwk, kbk, kwq, kbq, kwv, kbv = jax.random.split(key, 7)

    x = jax.random.normal(kx, (B, T, D_MODEL), dtype=jnp.float32)
    # Deterministic parameter init (synthetic, not a checkpoint load).
    wk = jax.random.normal(kwk, (D_MODEL, HEAD_DIM), dtype=jnp.float32) * 0.1
    bk = jax.random.normal(kbk, (HEAD_DIM,), dtype=jnp.float32) * 0.1
    wq = jax.random.normal(kwq, (D_MODEL, HEAD_DIM), dtype=jnp.float32) * 0.1
    bq = jax.random.normal(kbq, (HEAD_DIM,), dtype=jnp.float32) * 0.1
    wv = jax.random.normal(kwv, (D_MODEL, HEAD_DIM), dtype=jnp.float32) * 0.1
    bv = jax.random.normal(kbv, (HEAD_DIM,), dtype=jnp.float32) * 0.1

    # One-time prep (hoisted out of the per-call path).
    wb_qkv, mask_add = prepare_attention_head(wk, bk, wq, bq, wv, bv, batch=B, seq=T)
    wb_qkv = jax.block_until_ready(wb_qkv)
    mask_add = jax.block_until_ready(mask_add)

    out = attention_head(x, wb_qkv, mask_add)
    out = jax.block_until_ready(out)

    ref = reference(x, wk, bk, wq, bq, wv, bv)
    assert out.shape == (B, T, HEAD_DIM)
    # bf16 at the MXU boundaries (f32 accumulation) + approx reciprocal:
    # softmax rows sum to 1 only to ~1e-3 relative; tolerance relaxed to 2e-2.
    assert jnp.allclose(out, ref, atol=2e-2, rtol=2e-2), "mismatch vs reference"

    # TODO(synk): dropout is identity in eval mode; training-mode dropout masks
    # (pltpu.prng_*) were intentionally not applied.
    print("KERNEL_OK")
</pallas_src>

<mosaic_0001>
module attributes {stable_mosaic.version = 11 : i64} {
  func.func @attention_head_kernel(%arg0: i32, %arg1: memref<16x32xf32, #tpu.memory_space<vmem>>, %arg2: memref<33x24xbf16, #tpu.memory_space<vmem>>, %arg3: memref<16x16xf32, #tpu.memory_space<vmem>>, %arg4: memref<16x8xf32, #tpu.memory_space<vmem>>) attributes {dimension_semantics = [#tpu.dimension_semantics<arbitrary>], iteration_bounds = array<i64: 1>, scalar_prefetch = 0 : i64, scratch_operands = 0 : i64, tpu.core_type = #tpu.core_type<tc>, window_params = [{pipeline_mode = #tpu.pipeline_mode<synchronous>, transform_indices = @transform_0, window_bounds = array<i64: 16, 32>}, {pipeline_mode = #tpu.pipeline_mode<synchronous>, transform_indices = @transform_1, window_bounds = array<i64: 33, 24>}, {pipeline_mode = #tpu.pipeline_mode<synchronous>, transform_indices = @transform_2, window_bounds = array<i64: 16, 16>}, {pipeline_mode = #tpu.pipeline_mode<synchronous>, transform_indices = @transform_3, window_bounds = array<i64: 16, 8>}]} {
    %c0 = arith.constant 0 : index
    %c0_0 = arith.constant 0 : index
    %0 = vector.load %arg1[%c0, %c0_0] : memref<16x32xf32, #tpu.memory_space<vmem>>, vector<16x32xf32>
    %1 = arith.truncf %0 : vector<16x32xf32> to vector<16x32xbf16>
    %c0_1 = arith.constant 0 : index
    %c0_2 = arith.constant 0 : index
    %2 = vector.load %arg2[%c0_1, %c0_2] : memref<33x24xbf16, #tpu.memory_space<vmem>>, vector<32x24xbf16>
    %c32 = arith.constant 32 : index
    %c0_3 = arith.constant 0 : index
    %3 = vector.load %arg2[%c32, %c0_3] : memref<33x24xbf16, #tpu.memory_space<vmem>>, vector<1x24xbf16>
    %4 = arith.extf %3 : vector<1x24xbf16> to vector<1x24xf32>
    %cst = arith.constant dense<0.000000e+00> : vector<16x24xf32>
    %5 = tpu.matmul %1, %2, %cst {dimension_numbers = #tpu.dot_dimension_numbers<[1], [0], [0], [1], [0, 0, 1, 1], [], []>} : vector<16x32xbf16>, vector<32x24xbf16>, vector<16x24xf32> -> vector<16x24xf32>
    %6 = vector.broadcast %4 : vector<1x24xf32> to vector<16x24xf32>
    %7 = arith.addf %5, %6 : vector<16x24xf32>
    %8 = vector.extract_strided_slice %7 {offsets = [0, 0], sizes = [16, 8], strides = [1, 1]} : vector<16x24xf32> to vector<16x8xf32>
    %9 = arith.truncf %8 : vector<16x8xf32> to vector<16x8xbf16>
    %10 = vector.extract_strided_slice %7 {offsets = [0, 8], sizes = [16, 8], strides = [1, 1]} : vector<16x24xf32> to vector<16x8xf32>
    %11 = arith.truncf %10 : vector<16x8xf32> to vector<16x8xbf16>
    %12 = vector.extract_strided_slice %7 {offsets = [0, 16], sizes = [16, 8], strides = [1, 1]} : vector<16x24xf32> to vector<16x8xf32>
    %13 = arith.truncf %12 : vector<16x8xf32> to vector<16x8xbf16>
    %cst_4 = arith.constant dense<0.000000e+00> : vector<16x16xf32>
    %14 = tpu.matmul %9, %11, %cst_4 {dimension_numbers = #tpu.dot_dimension_numbers<[1], [1], [0], [0], [0, 0, 1, 0], [], []>} : vector<16x8xbf16>, vector<16x8xbf16>, vector<16x16xf32> -> vector<16x16xf32>
    %c0_5 = arith.constant 0 : index
    %c0_6 = arith.constant 0 : index
    %15 = vector.load %arg3[%c0_5, %c0_6] : memref<16x16xf32, #tpu.memory_space<vmem>>, vector<16x16xf32>
    %16 = arith.addf %14, %15 : vector<16x16xf32>
    %cst_7 = arith.constant dense<0xFF800000> : vector<16xf32>
    %17 = vector.multi_reduction <maximumf>, %16, %cst_7 [1] : vector<16x16xf32> to vector<16xf32>
    %18 = vector.shape_cast %17 : vector<16xf32> to vector<16x1xf32>
    %19 = vector.broadcast %18 : vector<16x1xf32> to vector<16x16xf32>
    %20 = arith.subf %16, %19 : vector<16x16xf32>
    %21 = math.exp %20 : vector<16x16xf32>
    %cst_8 = arith.constant dense<0.000000e+00> : vector<16xf32>
    %22 = vector.multi_reduction <add>, %21, %cst_8 [1] : vector<16x16xf32> to vector<16xf32>
    %23 = vector.shape_cast %22 : vector<16xf32> to vector<16x1xf32>
    %24 = arith.truncf %21 : vector<16x16xf32> to vector<16x16xbf16>
    %cst_9 = arith.constant dense<0.000000e+00> : vector<16x8xf32>
    %25 = tpu.matmul %24, %13, %cst_9 {dimension_numbers = #tpu.dot_dimension_numbers<[1], [0], [0], [1], [0, 0, 1, 1], [], []>} : vector<16x16xbf16>, vector<16x8xbf16>, vector<16x8xf32> -> vector<16x8xf32>
    %26 = tpu.reciprocal %23 {approx = true} : vector<16x1xf32> -> vector<16x1xf32>
    %27 = vector.broadcast %26 : vector<16x1xf32> to vector<16x8xf32>
    %28 = arith.mulf %25, %27 : vector<16x8xf32>
    %c0_10 = arith.constant 0 : index
    %c0_11 = arith.constant 0 : index
    %29 = vector.load %arg4[%c0_10, %c0_11] : memref<16x8xf32, #tpu.memory_space<vmem>>, vector<16x8xf32>
    tpu.vector_store %arg4[%c0_10, %c0_11], %28 {strides = array<i32>} : memref<16x8xf32, #tpu.memory_space<vmem>>, vector<16x8xf32>,
    return
  }
  func.func @transform_0(%arg0: i32) -> (i32, i32) {
    %c0_i32 = arith.constant 0 : i32
    %c0_i32_0 = arith.constant 0 : i32
    %c0_i32_1 = arith.constant 0 : i32
    return %c0_i32, %c0_i32_0 : i32, i32
  }
  func.func @transform_1(%arg0: i32) -> (i32, i32) {
    %c0_i32 = arith.constant 0 : i32
    %c0_i32_0 = arith.constant 0 : i32
    %c0_i32_1 = arith.constant 0 : i32
    return %c0_i32, %c0_i32_0 : i32, i32
  }
  func.func @transform_2(%arg0: i32) -> (i32, i32) {
    %c0_i32 = arith.constant 0 : i32
    %c0_i32_0 = arith.constant 0 : i32
    %c0_i32_1 = arith.constant 0 : i32
    return %c0_i32, %c0_i32_0 : i32, i32
  }
  func.func @transform_3(%arg0: i32) -> (i32, i32) {
    %c0_i32 = arith.constant 0 : i32
    %c0_i32_0 = arith.constant 0 : i32
    %c0_i32_1 = arith.constant 0 : i32
    return %c0_i32, %c0_i32_0 : i32, i32
  }
}

</mosaic_0001>

<llo_original>
// kernel: tpu_custom_call.1
$region0: #{tpu_custom_call.1}
  #allocation0 [shape = 'u32[]', space=smem, size = 0x4, offset = 0x4, fixed_abs, tag = 'smem constant byte address 0x4 - core index']
  #allocation1 [shape = 'u32[144,128]{1,0:T(1,128)}', space=vmem, size = 0x12000, scoped, tag = 'internal scratch']
  %s0 = inlined_call_operand.vmem [shape: f32[16,32], index: 0, kind: input, shape index: {}]
  %s1 = inlined_call_operand.vmem [shape: bf16[33,24], index: 1, kind: input, shape index: {}]
  %s2 = inlined_call_operand.vmem [shape: f32[16,16], index: 2, kind: input, shape index: {}]
  %s3 = inlined_call_operand.vmem [shape: f32[16,8], index: 3, kind: output, shape index: {}]
  %s4 = sld [smem:[#allocation0]]
  $region22: #{tpu_custom_call.1} parent=0
    _
  %s6 = ssub.s32 1, %s4
  %s7 = scalar_select 0, %s6, %s4
  // Predicated region
  $region2: #{tpu_custom_call.1} parent=0 // pred_check
    _
  $region3: #{tpu_custom_call.1} parent=0 // pred_check_branch
    %9 = sbr.rel (0) target = $region5
  $region4: #{tpu_custom_call.1} parent=0 // pred_region
    _
  $region5: #{tpu_custom_call.1} parent=0 // pred_fallthru
    _
  // Predicated region
  $region6: #{tpu_custom_call.1} parent=0 // pred_check
    _
  $region7: #{tpu_custom_call.1} parent=0 // pred_check_branch
    %11 = sbr.rel (0) target = $region9
  $region8: #{tpu_custom_call.1} parent=0 // pred_region
    _
  $region9: #{tpu_custom_call.1} parent=0 // pred_fallthru
    _
  // Predicated region
  $region10: #{tpu_custom_call.1} parent=0 // pred_check
    _
  $region11: #{tpu_custom_call.1} parent=0 // pred_check_branch
    %13 = sbr.rel (0) target = $region13
  $region12: #{tpu_custom_call.1} parent=0 // pred_region
    _
  $region13: #{tpu_custom_call.1} parent=0 // pred_fallthru
    _
  %v15 = vld [vmem:[%s0] sm:$0xff]
  %v16 = vld [vmem:[%s0 + $0x8] sm:$0xff]
  %v17 = vpack.c.bf16 %v16, %v15
  %v18 = vld [vmem:[%s1] sm:$0xf]
  %v19 = vld [vmem:[%s1 + $0x4] sm:$0xf]
  %v20 = vld [vmem:[%s1 + $0x8] sm:$0xf]
  %v21 = vld [vmem:[%s1 + $0xc] sm:$0xf]
  %v22 = vld [vmem:[%s1 + $0x10] sm:$0x1]
  %v23 = vunpack.c.l.bf16 %v22
  %v24 = vlaneseq
  %v25 = vshrl.u32 %v24, 7
  %v26 = vsub.s32 0, %v25
  %v27 = vrot.slane %v23, %v26
  %v32 = vunpack.c.l.b16 %v18
  %v33 = vunpack.c.l.b16 %v19
  %v34 = vunpack.c.l.b16 %v20
  %v35 = vunpack.c.l.b16 %v21
  %v36 = vpack.c.b16 %v33, %v32
  %v37 = vpack.c.b16 %v35, %v34
  %vm40 = vcmask 261120
  %v42 = vsel %vm40, %v17, 0
  %44 = vmatprep.subr.bf16.mxu0 0
  %45 = vmatpush1.bf16.msra.mxu0 0
  %46 = vmatprep.subr.bf16.mxu0 0
  %47 = vmatpush1.bf16.msra.mxu0 0
  %48 = vmatprep.subr.bf16.mxu0 0
  %49 = vmatpush1.bf16.msra.mxu0 0
  %50 = vmatprep.subr.bf16.mxu0 0
  %51 = vmatpush1.bf16.msra.mxu0 0
  %52 = vmatprep.subr.bf16.mxu0 0
  %53 = vmatpush1.bf16.msra.mxu0 0
  %54 = vmatprep.subr.bf16.mxu0 0
  %55 = vmatpush1.bf16.msra.mxu0 0
  %56 = vmatprep.subr.bf16.mxu0 0
  %57 = vmatpush1.bf16.msra.mxu0 %v37
  %58 = vmatprep.subr.bf16.mxu0 0
  %59 = vmatpush1.bf16.msra.mxu0 %v36
  %60 = vmatprep.subr.bf16.mxu0 0
  %61 = vmatpush2.bf16.msra.mxu0 0
  %62 = vmatprep.subr.bf16.mxu0 0
  %63 = vmatpush2.bf16.msra.mxu0 0
  %64 = vmatprep.subr.bf16.mxu0 0
  %65 = vmatpush2.bf16.msra.mxu0 0
  %66 = vmatprep.subr.bf16.mxu0 0
  %67 = vmatpush2.bf16.msra.mxu0 0
  %68 = vmatprep.subr.bf16.mxu0 0
  %69 = vmatpush2.bf16.msra.mxu0 0
  %70 = vmatprep.subr.bf16.mxu0 0
  %71 = vmatpush2.bf16.msra.mxu0 0
  %72 = vmatprep.subr.bf16.mxu0 0
  %73 = vmatpush2.bf16.msra.mxu0 0
  %74 = vmatprep.subr.bf16.mxu0 0
  %75 = vmatpush2.bf16.msra.mxu0 0
  %76 = vmatprep.mubr.bf16.mxu0 0
  %77 = vmatmul.mubr.bf16.gmra.mxu0 %v42
  %v78 = vpop.f32.mrf.mxu0
  %v79 = vadd.f32 %v27, %v78
  %v80 = vpop.f32.mrf.mxu0
  %v81 = vpop.f32.mrf.mxu0
  %v82 = vadd.f32 %v27, %v81
  %v83 = vpop.f32.mrf.mxu0
  %84 = vdwg.mxu0
  %v85 = vpack.c.bf16 %v82, %v79
  %v86 = vld [vmem:[%s2] sm:$0xff]
  %v87 = vld [vmem:[%s2 + $0x8] sm:$0xff]
  %89 = vrot.lane.b32.xlu0 %v85, 120
  %v90 = vpop.permute.xlu0 %89
  %vm91 = vcmask 64512
  %v93 = vsel %vm91, %v85, 0
  %v96 = vsel %vm91, %v90, 0
  %98 = vmatprep.subr.bf16.mxu0 0
  %99 = vmatpush1.bf16.xpose.msra.mxu0 0
  %100 = vmatprep.subr.bf16.mxu0 0
  %101 = vmatpush1.bf16.xpose.msra.mxu0 0
  %102 = vmatprep.subr.bf16.mxu0 0
  %103 = vmatpush1.bf16.xpose.msra.mxu0 0
  %104 = vmatprep.subr.bf16.mxu0 0
  %105 = vmatpush1.bf16.xpose.msra.mxu0 0
  %106 = vmatprep.subr.bf16.mxu0 0
  %107 = vmatpush1.bf16.xpose.msra.mxu0 0
  %108 = vmatprep.subr.bf16.mxu0 0
  %109 = vmatpush1.bf16.xpose.msra.mxu0 0
  %110 = vmatprep.subr.bf16.mxu0 0
  %111 = vmatpush1.bf16.xpose.msra.mxu0 0
  %112 = vmatprep.subr.bf16.mxu0 0
  %113 = vmatpush1.bf16.xpose.msra.mxu0 %v96
  %114 = vmatprep.subr.bf16.mxu0 0
  %115 = vmatpush2.bf16.xpose.msra.mxu0 0
  %116 = vmatprep.subr.bf16.mxu0 0
  %117 = vmatpush2.bf16.xpose.msra.mxu0 0
  %118 = vmatprep.subr.bf16.mxu0 0
  %119 = vmatpush2.bf16.xpose.msra.mxu0 0
  %120 = vmatprep.subr.bf16.mxu0 0
  %121 = vmatpush2.bf16.xpose.msra.mxu0 0
  %122 = vmatprep.subr.bf16.mxu0 0
  %123 = vmatpush2.bf16.xpose.msra.mxu0 0
  %124 = vmatprep.subr.bf16.mxu0 0
  %125 = vmatpush2.bf16.xpose.msra.mxu0 0
  %126 = vmatprep.subr.bf16.mxu0 0
  %127 = vmatpush2.bf16.xpose.msra.mxu0 0
  %128 = vmatprep.subr.bf16.mxu0 0
  %129 = vmatpush2.bf16.xpose.msra.mxu0 0
  %130 = vmatprep.mubr.bf16.mxu0 0
  %131 = vmatmul.mubr.bf16.gmra.mxu0 %v93
  %v132 = vpop.f32.mrf.mxu0
  %v133 = vadd.f32 %v86, %v132
  %v134 = vpop.f32.mrf.mxu0
  %v135 = vpop.f32.mrf.mxu0
  %v136 = vadd.f32 %v87, %v135
  %v137 = vpop.f32.mrf.mxu0
  %138 = vdwg.mxu0
  %vm139 = vcmask 130048
  %v140 = vsel %vm139, %v133, -inf
  %141 = vmax.xlane.f32.xlu0 %v140
  %v142 = vpop.xlane.xlu0 %141
  %v143 = vsel %vm139, %v136, -inf
  %144 = vmax.xlane.f32.xlu0 %v143
  %v145 = vpop.xlane.xlu0 %144
  %v146 = vsub.f32 %v133, %v142
  %v147 = vsub.f32 %v136, %v145
  %v148 = vmul.f32 %v146, 1.442695
  %v149 = vpow.pop %v148
  %v150 = vmul.f32 %v147, 1.442695
  %v151 = vpow.pop %v150
  %v152 = vsel %vm139, %v149, 0.0
  %153 = vadd.xlane.f32.xlu0 %v152
  %v154 = vpop.xlane.xlu0 %153
  %v155 = vsel %vm139, %v151, 0.0
  %156 = vadd.xlane.f32.xlu0 %v155
  %v157 = vpop.xlane.xlu0 %156
  %v158 = vpack.c.bf16 %v151, %v149
  %159 = vrot.lane.b32.xlu0 %v85, 112
  %v160 = vpop.permute.xlu0 %159
  %v163 = vsel %vm139, %v158, 0
  %165 = vmatprep.subr.bf16.mxu0 0
  %166 = vmatpush1.bf16.msra.mxu0 0
  %167 = vmatprep.subr.bf16.mxu0 0
  %168 = vmatpush1.bf16.msra.mxu0 0
  %169 = vmatprep.subr.bf16.mxu0 0
  %170 = vmatpush1.bf16.msra.mxu0 0
  %171 = vmatprep.subr.bf16.mxu0 0
  %172 = vmatpush1.bf16.msra.mxu0 0
  %173 = vmatprep.subr.bf16.mxu0 0
  %174 = vmatpush1.bf16.msra.mxu0 0
  %175 = vmatprep.subr.bf16.mxu0 0
  %176 = vmatpush1.bf16.msra.mxu0 0
  %177 = vmatprep.subr.bf16.mxu0 0
  %178 = vmatpush1.bf16.msra.mxu0 0
  %179 = vmatprep.subr.bf16.mxu0 0
  %180 = vmatpush1.bf16.msra.mxu0 %v160
  %181 = vmatprep.subr.bf16.mxu0 0
  %182 = vmatpush2.bf16.msra.mxu0 0
  %183 = vmatprep.subr.bf16.mxu0 0
  %184 = vmatpush2.bf16.msra.mxu0 0
  %185 = vmatprep.subr.bf16.mxu0 0
  %186 = vmatpush2.bf16.msra.mxu0 0
  %187 = vmatprep.subr.bf16.mxu0 0
  %188 = vmatpush2.bf16.msra.mxu0 0
  %189 = vmatprep.subr.bf16.mxu0 0
  %190 = vmatpush2.bf16.msra.mxu0 0
  %191 = vmatprep.subr.bf16.mxu0 0
  %192 = vmatpush2.bf16.msra.mxu0 0
  %193 = vmatprep.subr.bf16.mxu0 0
  %194 = vmatpush2.bf16.msra.mxu0 0
  %195 = vmatprep.subr.bf16.mxu0 0
  %196 = vmatpush2.bf16.msra.mxu0 0
  %197 = vmatprep.mubr.bf16.mxu0 0
  %198 = vmatmul.mubr.bf16.gmra.mxu0 %v163
  %v199 = vpop.f32.mrf.mxu0
  %v200 = vadd.f32 0.0, %v199
  %v201 = vpop.f32.mrf.mxu0
  %v202 = vpop.f32.mrf.mxu0
  %v203 = vadd.f32 0.0, %v202
  %v204 = vpop.f32.mrf.mxu0
  %205 = vdwg.mxu0
  %v206 = vrcp.pop %v154
  %v207 = vrcp.pop %v157
  %v208 = vmul.f32 %v200, %v206
  %v209 = vmul.f32 %v203, %v207
  %210 = vst.msk [vmem:[%s3] sm:$0xff] %vm91, %v208
  %211 = vst.msk [vmem:[%s3 + $0x8] sm:$0xff] %vm91, %v209
  // Predicated region
  $region14: #{tpu_custom_call.1} parent=0 // pred_check
    _
  $region15: #{tpu_custom_call.1} parent=0 // pred_check_branch
    %213 = sbr.rel (0) target = $region17
  $region16: #{tpu_custom_call.1} parent=0 // pred_region
    _
  $region17: #{tpu_custom_call.1} parent=0 // pred_fallthru
    _
  // Predicated region
  $region18: #{tpu_custom_call.1} parent=0 // pred_check
    _
  $region19: #{tpu_custom_call.1} parent=0 // pred_check_branch
    %215 = sbr.rel (0) target = $region21
  $region20: #{tpu_custom_call.1} parent=0 // pred_region
    _
  $region21: #{tpu_custom_call.1} parent=0 // pred_fallthru
    _

</llo_original>
